<compile_context>
chip_gen: v5e
topology: v5e:2x2
jax: 0.10.0
libtpu: 0.0.40
codegen_flags: <defaults>
</compile_context>

<pallas_src>
import math
from functools import partial

import jax
import jax.numpy as jnp
from jax.experimental import pallas as pl
from jax.experimental.pallas import tpu as pltpu

_LN2 = math.log(2.0)


def _round_up(x, m):
    return ((x + m - 1) // m) * m


def _pick_tm(n_rows, d, itemsize, *, vmem_budget_bytes=20 << 20, cap=4096):
    """Largest row tile (multiple of 8) s.t. 3 inputs x 2 pipeline buffers fit the budget."""
    per_row = 3 * 2 * d * itemsize
    tm = vmem_budget_bytes // max(per_row, 1)
    tm = min(int(tm), cap, _round_up(max(n_rows, 1), 8))
    return max(8, (tm // 8) * 8)


def _vmem_limit_bytes():
    """Generation-aware scoped-VMEM limit (<= 3/4 of physical, capped; 48 MiB fallback)."""
    try:
        info = pltpu.get_tpu_info()
        cap = getattr(info, "vmem_capacity_bytes", None)
        if cap:
            return int(min(cap * 3 // 4, 96 << 20))
    except Exception:
        pass
    return 48 << 20


def _num_core_splits():
    """2-way split only on dual-TensorCore chips (v7x); 1 elsewhere (v5e/v6e)."""
    # TODO(synk): replace device_kind heuristic with a TC-count query once exposed by get_tpu_info.
    try:
        kind = jax.devices()[0].device_kind.lower()
        if "v7" in kind:
            return 2
    except Exception:
        pass
    return 1


def _jsd_kernel(p_ref, q_ref, r_ref, acc_ref, *, tm, d, n_rows, blocks_per_split, core_split):
    if core_split:
        i = pl.program_id(0)          # TensorCore split (CORE_PARALLEL)
        j = pl.program_id(1)          # row-block within split (reduction axis)
        blk = i * blocks_per_split + j  # logical (unclamped) row-block index
    else:
        j = pl.program_id(0)
        blk = j

    @pl.when(j == 0)
    def _():
        acc_ref[...] = jnp.zeros_like(acc_ref)

    p = p_ref[...].astype(jnp.float32)
    q = q_ref[...].astype(jnp.float32)
    r = r_ref[...].astype(jnp.float32)

    lp = jnp.log(p)
    lq = jnp.log(q)
    lr = jnp.log(r)
    pq = p + q
    pr = p + r
    qr = q + r
    # log(0.5*(x+y)) = log(x+y) - ln2; the ln2 pieces are folded into the ln2*(p+q+r) term.
    elem = (p * lp + q * lq + r * lr
            - 0.5 * (pq * jnp.log(pq) + pr * jnp.log(pr) + qr * jnp.log(qr))
            + _LN2 * (p + q + r))

    row_start = blk * tm
    is_partial = row_start + tm > n_rows  # covers the partial edge block and clamped duplicates

    @pl.when(jnp.logical_not(is_partial))
    def _():
        # Fold (tm, D) -> (1, 8, D) with pure vector adds; final full reduce happens in JAX.
        acc_ref[...] += elem.reshape(1, tm // 8, 8, d).sum(axis=1)

    @pl.when(is_partial)
    def _():
        # (tm, 1) iota mask; select (not multiply) so NaN/Inf from OOB garbage never propagates.
        row_ids = row_start + jax.lax.broadcasted_iota(jnp.int32, (tm, 1), 0)
        masked = jnp.where(row_ids < n_rows, elem, 0.0)
        acc_ref[...] += masked.reshape(1, tm // 8, 8, d).sum(axis=1)


def jsd_pallas(p, q, r, masks):
    """Matches JSD.forward semantics. p, q, r: same shape, last dim = distribution axis."""
    d = p.shape[-1]
    p2 = p.reshape(-1, d)
    q2 = q.reshape(-1, d)
    r2 = r.reshape(-1, d)
    n = p2.shape[0]

    itemsize = max(jnp.dtype(p2.dtype).itemsize,
                   jnp.dtype(q2.dtype).itemsize,
                   jnp.dtype(r2.dtype).itemsize)
    tm = _pick_tm(n, d, itemsize)
    # TODO(synk): for vocab-sized D, also block the lane axis (grid over D // tk) so the
    #             double-buffered pipeline stays within VMEM on v7x.

    num_blocks = pl.cdiv(n, tm)
    num_splits = _num_core_splits()

    cost = pl.CostEstimate(
        flops=20 * n * d,
        transcendentals=6 * n * d,
        bytes_accessed=3 * n * d * itemsize + num_splits * 8 * d * 4,
    )
    vmem_limit = _vmem_limit_bytes()

    if num_splits > 1:
        blocks_per_split = pl.cdiv(num_blocks, num_splits)
        grid = (num_splits, blocks_per_split)

        def in_map(i, j):
            # Clamp logical block index; out-of-range blocks are fully masked in the kernel.
            return (jnp.minimum(i * blocks_per_split + j, num_blocks - 1), 0)

        out_map = lambda i, j: (i, 0, 0)
        semantics = (pltpu.CORE_PARALLEL, pltpu.ARBITRARY)
        kernel = partial(_jsd_kernel, tm=tm, d=d, n_rows=n,
                         blocks_per_split=blocks_per_split, core_split=True)
    else:
        grid = (num_blocks,)
        in_map = lambda j: (j, 0)
        out_map = lambda j: (0, 0, 0)
        semantics = (pltpu.ARBITRARY,)
        kernel = partial(_jsd_kernel, tm=tm, d=d, n_rows=n,
                         blocks_per_split=num_blocks, core_split=False)

    row_spec = pl.BlockSpec((tm, d), in_map)

    partials = pl.pallas_call(
        kernel,
        out_shape=jax.ShapeDtypeStruct((num_splits, 8, d), jnp.float32),
        grid_spec=pltpu.PrefetchScalarGridSpec(
            num_scalar_prefetch=0,
            grid=grid,
            in_specs=[row_spec, row_spec, row_spec],
            out_specs=pl.BlockSpec((1, 8, d), out_map),
        ),
        compiler_params=pltpu.CompilerParams(
            dimension_semantics=semantics,
            vmem_limit_bytes=vmem_limit,
        ),
        cost_estimate=cost,
    )(p2, q2, r2)

    jsd_sum = jnp.sum(partials) / 3.0
    denom = jnp.maximum(jnp.float32(1e-6), jnp.sum(masks.astype(jnp.float32)))
    return jsd_sum / denom


def _jsd_reference(p, q, r, masks):
    d = p.shape[-1]
    p = p.reshape(-1, d).astype(jnp.float32)
    q = q.reshape(-1, d).astype(jnp.float32)
    r = r.reshape(-1, d).astype(jnp.float32)
    m_pq = jnp.log(0.5 * (p + q))
    m_pr = jnp.log(0.5 * (p + r))
    m_qr = jnp.log(0.5 * (q + r))
    kl = lambda inp, tgt: jnp.exp(tgt) * (tgt - inp)
    jsd_pq = 0.5 * (kl(m_pq, jnp.log(p)) + kl(m_pq, jnp.log(q)))
    jsd_pr = 0.5 * (kl(m_pr, jnp.log(p)) + kl(m_pr, jnp.log(r)))
    jsd_qr = 0.5 * (kl(m_qr, jnp.log(q)) + kl(m_qr, jnp.log(r)))
    jsd_total = (jsd_pq + jsd_pr + jsd_qr) / 3.0
    return jnp.sum(jsd_total) / jnp.maximum(1e-6, jnp.sum(masks.astype(jnp.float32)))


if __name__ == "__main__":
    key = jax.random.PRNGKey(0)
    kp, kq, kr, km = jax.random.split(key, 4)

    B, S, D = 2, 8, 128  # p/q/r: (B, S, D) probability distributions along D
    p = jax.nn.softmax(jax.random.normal(kp, (B, S, D), dtype=jnp.float32), axis=-1)
    q = jax.nn.softmax(jax.random.normal(kq, (B, S, D), dtype=jnp.float32), axis=-1)
    r = jax.nn.softmax(jax.random.normal(kr, (B, S, D), dtype=jnp.float32), axis=-1)
    masks = (jax.random.uniform(km, (B, S)) > 0.3).astype(jnp.float32)

    out = jax.block_until_ready(jsd_pallas(p, q, r, masks))
    ref = jax.block_until_ready(_jsd_reference(p, q, r, masks))

    assert jnp.isfinite(out), "non-finite output"
    assert jnp.allclose(out, ref, rtol=1e-4, atol=1e-6), (out, ref)
    print("KERNEL_OK")
</pallas_src>

<mosaic_0001>
module attributes {stable_mosaic.version = 11 : i64} {
  func.func @_jsd_kernel(%arg0: i32, %arg1: memref<16x128xf32, #tpu.memory_space<vmem>>, %arg2: memref<16x128xf32, #tpu.memory_space<vmem>>, %arg3: memref<16x128xf32, #tpu.memory_space<vmem>>, %arg4: memref<1x8x128xf32, #tpu.memory_space<vmem>>) attributes {dimension_semantics = [#tpu.dimension_semantics<arbitrary>], iteration_bounds = array<i64: 1>, scalar_prefetch = 0 : i64, scratch_operands = 0 : i64, tpu.core_type = #tpu.core_type<tc>, window_params = [{transform_indices = @transform_0, window_bounds = array<i64: 16, 128>}, {transform_indices = @transform_1, window_bounds = array<i64: 16, 128>}, {transform_indices = @transform_2, window_bounds = array<i64: 16, 128>}, {pipeline_mode = #tpu.pipeline_mode<synchronous>, transform_indices = @transform_3, window_bounds = array<i64: 1, 8, 128>}]} {
    %c0_i32 = arith.constant 0 : i32
    %0 = arith.cmpi eq, %arg0, %c0_i32 : i32
    %1 = arith.extui %0 : i1 to i32
    %c0_i32_0 = arith.constant 0 : i32
    %2 = arith.cmpi ne, %1, %c0_i32_0 : i32
    scf.if %2 {
      %cst_11 = arith.constant 0.000000e+00 : f32
      %41 = vector.broadcast %cst_11 : f32 to vector<1x8x128xf32>
      %c0_12 = arith.constant 0 : index
      %c0_13 = arith.constant 0 : index
      %c0_14 = arith.constant 0 : index
      %42 = vector.load %arg4[%c0_12, %c0_13, %c0_14] : memref<1x8x128xf32, #tpu.memory_space<vmem>>, vector<1x8x128xf32>
      tpu.vector_store %arg4[%c0_12, %c0_13, %c0_14], %41 {strides = array<i32>} : memref<1x8x128xf32, #tpu.memory_space<vmem>>, vector<1x8x128xf32>,
    } else {
    }
    %c0 = arith.constant 0 : index
    %c0_1 = arith.constant 0 : index
    %3 = vector.load %arg1[%c0, %c0_1] : memref<16x128xf32, #tpu.memory_space<vmem>>, vector<16x128xf32>
    %c0_2 = arith.constant 0 : index
    %c0_3 = arith.constant 0 : index
    %4 = vector.load %arg2[%c0_2, %c0_3] : memref<16x128xf32, #tpu.memory_space<vmem>>, vector<16x128xf32>
    %c0_4 = arith.constant 0 : index
    %c0_5 = arith.constant 0 : index
    %5 = vector.load %arg3[%c0_4, %c0_5] : memref<16x128xf32, #tpu.memory_space<vmem>>, vector<16x128xf32>
    %6 = math.log %3 : vector<16x128xf32>
    %7 = math.log %4 : vector<16x128xf32>
    %8 = math.log %5 : vector<16x128xf32>
    %9 = arith.addf %3, %4 : vector<16x128xf32>
    %10 = arith.addf %3, %5 : vector<16x128xf32>
    %11 = arith.addf %4, %5 : vector<16x128xf32>
    %12 = arith.mulf %3, %6 : vector<16x128xf32>
    %13 = arith.mulf %4, %7 : vector<16x128xf32>
    %14 = arith.addf %12, %13 : vector<16x128xf32>
    %15 = arith.mulf %5, %8 : vector<16x128xf32>
    %16 = arith.addf %14, %15 : vector<16x128xf32>
    %17 = math.log %9 : vector<16x128xf32>
    %18 = arith.mulf %9, %17 : vector<16x128xf32>
    %19 = math.log %10 : vector<16x128xf32>
    %20 = arith.mulf %10, %19 : vector<16x128xf32>
    %21 = arith.addf %18, %20 : vector<16x128xf32>
    %22 = math.log %11 : vector<16x128xf32>
    %23 = arith.mulf %11, %22 : vector<16x128xf32>
    %24 = arith.addf %21, %23 : vector<16x128xf32>
    %cst = arith.constant 5.000000e-01 : f32
    %25 = vector.broadcast %cst : f32 to vector<16x128xf32>
    %26 = arith.mulf %25, %24 : vector<16x128xf32>
    %27 = arith.subf %16, %26 : vector<16x128xf32>
    %28 = arith.addf %3, %4 : vector<16x128xf32>
    %29 = arith.addf %28, %5 : vector<16x128xf32>
    %cst_6 = arith.constant 0.693147182 : f32
    %30 = vector.broadcast %cst_6 : f32 to vector<16x128xf32>
    %31 = arith.mulf %30, %29 : vector<16x128xf32>
    %32 = arith.addf %27, %31 : vector<16x128xf32>
    %c16_i32 = arith.constant 16 : i32
    %33 = arith.muli %arg0, %c16_i32 : i32
    %c16_i32_7 = arith.constant 16 : i32
    %34 = arith.addi %33, %c16_i32_7 : i32
    %c16_i32_8 = arith.constant 16 : i32
    %35 = arith.cmpi sgt, %34, %c16_i32_8 : i32
    %true = arith.constant true
    %36 = arith.xori %35, %true : i1
    %37 = arith.extui %36 : i1 to i32
    %c0_i32_9 = arith.constant 0 : i32
    %38 = arith.cmpi ne, %37, %c0_i32_9 : i32
    scf.if %38 {
      %c0_11 = arith.constant 0 : index
      %c0_12 = arith.constant 0 : index
      %c0_13 = arith.constant 0 : index
      %41 = vector.load %arg4[%c0_11, %c0_12, %c0_13] : memref<1x8x128xf32, #tpu.memory_space<vmem>>, vector<1x8x128xf32>
      %42 = vector.shape_cast %32 : vector<16x128xf32> to vector<1x2x8x128xf32>
      %cst_14 = arith.constant dense<0.000000e+00> : vector<1x8x128xf32>
      %43 = vector.multi_reduction <add>, %42, %cst_14 [1] : vector<1x2x8x128xf32> to vector<1x8x128xf32>
      %44 = arith.addf %41, %43 : vector<1x8x128xf32>
      %c0_15 = arith.constant 0 : index
      %c0_16 = arith.constant 0 : index
      %c0_17 = arith.constant 0 : index
      %45 = vector.load %arg4[%c0_15, %c0_16, %c0_17] : memref<1x8x128xf32, #tpu.memory_space<vmem>>, vector<1x8x128xf32>
      tpu.vector_store %arg4[%c0_15, %c0_16, %c0_17], %44 {strides = array<i32>} : memref<1x8x128xf32, #tpu.memory_space<vmem>>, vector<1x8x128xf32>,
    } else {
    }
    %39 = arith.extui %35 : i1 to i32
    %c0_i32_10 = arith.constant 0 : i32
    %40 = arith.cmpi ne, %39, %c0_i32_10 : i32
    scf.if %40 {
      %41 = tpu.iota {dimensions = array<i32: 0>} : vector<16x1xi32>
      %42 = vector.broadcast %33 : i32 to vector<16x1xi32>
      %43 = arith.addi %42, %41 : vector<16x1xi32>
      %c16_i32_11 = arith.constant 16 : i32
      %44 = vector.broadcast %c16_i32_11 : i32 to vector<16x1xi32>
      %45 = arith.cmpi slt, %43, %44 : vector<16x1xi32>
      %cst_12 = arith.constant 0.000000e+00 : f32
      %46 = vector.shape_cast %45 : vector<16x1xi1> to vector<16x1xi1>
      %47 = vector.broadcast %46 : vector<16x1xi1> to vector<16x128xi1>
      %48 = vector.broadcast %cst_12 : f32 to vector<16x128xf32>
      %49 = arith.select %47, %32, %48 : vector<16x128xi1>, vector<16x128xf32>
      %c0_13 = arith.constant 0 : index
      %c0_14 = arith.constant 0 : index
      %c0_15 = arith.constant 0 : index
      %50 = vector.load %arg4[%c0_13, %c0_14, %c0_15] : memref<1x8x128xf32, #tpu.memory_space<vmem>>, vector<1x8x128xf32>
      %51 = vector.shape_cast %49 : vector<16x128xf32> to vector<1x2x8x128xf32>
      %cst_16 = arith.constant dense<0.000000e+00> : vector<1x8x128xf32>
      %52 = vector.multi_reduction <add>, %51, %cst_16 [1] : vector<1x2x8x128xf32> to vector<1x8x128xf32>
      %53 = arith.addf %50, %52 : vector<1x8x128xf32>
      %c0_17 = arith.constant 0 : index
      %c0_18 = arith.constant 0 : index
      %c0_19 = arith.constant 0 : index
      %54 = vector.load %arg4[%c0_17, %c0_18, %c0_19] : memref<1x8x128xf32, #tpu.memory_space<vmem>>, vector<1x8x128xf32>
      tpu.vector_store %arg4[%c0_17, %c0_18, %c0_19], %53 {strides = array<i32>} : memref<1x8x128xf32, #tpu.memory_space<vmem>>, vector<1x8x128xf32>,
    } else {
    }
    return
  }
  func.func @transform_0(%arg0: i32) -> (i32, i32) {
    %c0_i32 = arith.constant 0 : i32
    %c0_i32_0 = arith.constant 0 : i32
    return %arg0, %c0_i32 : i32, i32
  }
  func.func @transform_1(%arg0: i32) -> (i32, i32) {
    %c0_i32 = arith.constant 0 : i32
    %c0_i32_0 = arith.constant 0 : i32
    return %arg0, %c0_i32 : i32, i32
  }
  func.func @transform_2(%arg0: i32) -> (i32, i32) {
    %c0_i32 = arith.constant 0 : i32
    %c0_i32_0 = arith.constant 0 : i32
    return %arg0, %c0_i32 : i32, i32
  }
  func.func @transform_3(%arg0: i32) -> (i32, i32, i32) {
    %c0_i32 = arith.constant 0 : i32
    %c0_i32_0 = arith.constant 0 : i32
    %c0_i32_1 = arith.constant 0 : i32
    %c0_i32_2 = arith.constant 0 : i32
    return %c0_i32, %c0_i32_0, %c0_i32_1 : i32, i32, i32
  }
}

</mosaic_0001>

<llo_original>
// kernel: tpu_custom_call.1
$region0: #{tpu_custom_call.1}
  #allocation0 [shape = 'u32[]', space=smem, size = 0x4, offset = 0x4, fixed_abs, tag = 'smem constant byte address 0x4 - core index']
  #allocation1 [shape = 'u32[72,128]{1,0:T(1,128)}', space=vmem, size = 0x9000, scoped, tag = 'internal scratch']
  %s0 = inlined_call_operand.hbm [shape: f32[16,128], index: 0, kind: input, shape index: {}]
  %s1 = inlined_call_operand.hbm [shape: f32[16,128], index: 1, kind: input, shape index: {}]
  %s2 = inlined_call_operand.hbm [shape: f32[16,128], index: 2, kind: input, shape index: {}]
  %s3 = inlined_call_operand.hbm [shape: f32[1,8,128], index: 3, kind: output, shape index: {}]
  %s4 = sld [smem:[#allocation0]]
  $region46: #{tpu_custom_call.1} parent=0
    _
  %s6 = ssub.s32 1, %s4
  %s7 = scalar_select 0, %s6, %s4
  $region1: #{tpu_custom_call.1} parent=0
    #allocation2 [shape = 'u8[8192]{0}', space=vmem, size = 0x2000, scoped, tag = 'input window, operand 0, single buffered']
    #allocation3 [shape = 's32[1]{0}', space=sflag, size = 0x4, scoped, tag = 'scoped memory for tpu_custom_call.1']
    #allocation4 [shape = 's32[1]{0}', space=sflag, size = 0x4, scoped, tag = 'scoped memory for tpu_custom_call.1']
    #allocation5 [shape = 'u8[8192]{0}', space=vmem, size = 0x2000, scoped, tag = 'input window, operand 1, single buffered']
    #allocation6 [shape = 's32[1]{0}', space=sflag, size = 0x4, scoped, tag = 'scoped memory for tpu_custom_call.1']
    #allocation7 [shape = 'u8[8192]{0}', space=vmem, size = 0x2000, scoped, tag = 'input window, operand 2, single buffered']
    #allocation8 [shape = 'u8[4096]{0}', space=vmem, size = 0x1000, scoped, tag = 'output window, operand 0, single buffered']
    %8 = vsyncpa [#allocation3], 0
    %9 = vsyncpa [#allocation6], 0
    %10 = vsyncpa [#allocation4], 0
    // Predicated region
    $region2: #{tpu_custom_call.1} parent=1 // pred_check
      _
    $region3: #{tpu_custom_call.1} parent=1 // pred_check_branch
      %12 = sbr.rel (0) target = $region5
    $region4: #{tpu_custom_call.1} parent=1 // pred_region
      %14 = vsyncadd [#allocation3], 0
      %s15 = sshll.u32 %s0, 4
      %s16 = int_to_ptr.hbm [resolvable:$true] %s15
      %s17 = sshll.u32 [#allocation2], 4
      %s18 = int_to_ptr.vmem [resolvable:$true] %s17
      %23 = dma.hbm_to_vmem [thread:$0]  %s16, 256, %s18, [#allocation3], 128, 128, 8
    $region5: #{tpu_custom_call.1} parent=1 // pred_fallthru
      _
    // Predicated region
    $region6: #{tpu_custom_call.1} parent=1 // pred_check
      _
    $region7: #{tpu_custom_call.1} parent=1 // pred_check_branch
      %25 = sbr.rel (0) target = $region9
    $region8: #{tpu_custom_call.1} parent=1 // pred_region
      %27 = vsyncadd [#allocation6], 0
      %s28 = sshll.u32 %s1, 4
      %s29 = int_to_ptr.hbm [resolvable:$true] %s28
      %s30 = sshll.u32 [#allocation5], 4
      %s31 = int_to_ptr.vmem [resolvable:$true] %s30
      %36 = dma.hbm_to_vmem [thread:$0]  %s29, 256, %s31, [#allocation6], 128, 128, 8
    $region9: #{tpu_custom_call.1} parent=1 // pred_fallthru
      _
    // Predicated region
    $region10: #{tpu_custom_call.1} parent=1 // pred_check
      _
    $region11: #{tpu_custom_call.1} parent=1 // pred_check_branch
      %38 = sbr.rel (0) target = $region13
    $region12: #{tpu_custom_call.1} parent=1 // pred_region
      %40 = vsyncadd [#allocation6], 0
      %s41 = sshll.u32 %s2, 4
      %s42 = int_to_ptr.hbm [resolvable:$true] %s41
      %s43 = sshll.u32 [#allocation7], 4
      %s44 = int_to_ptr.vmem [resolvable:$true] %s43
      %49 = dma.hbm_to_vmem [thread:$0]  %s42, 256, %s44, [#allocation6], 128, 128, 8
    $region13: #{tpu_custom_call.1} parent=1 // pred_fallthru
      _
    // Predicated region
    $region14: #{tpu_custom_call.1} parent=1 // pred_check
      _
    $region15: #{tpu_custom_call.1} parent=1 // pred_check_branch
      %51 = sbr.rel (0) target = $region17
    $region16: #{tpu_custom_call.1} parent=1 // pred_region
      %53 = dma.done [#allocation3], 256
    $region17: #{tpu_custom_call.1} parent=1 // pred_fallthru
      _
    // Predicated region
    $region18: #{tpu_custom_call.1} parent=1 // pred_check
      _
    $region19: #{tpu_custom_call.1} parent=1 // pred_check_branch
      %55 = sbr.rel (0) target = $region21
    $region20: #{tpu_custom_call.1} parent=1 // pred_region
      %57 = dma.done [#allocation6], 256
    $region21: #{tpu_custom_call.1} parent=1 // pred_fallthru
      _
    // Predicated region
    $region22: #{tpu_custom_call.1} parent=1 // pred_check
      _
    $region23: #{tpu_custom_call.1} parent=1 // pred_check_branch
      %59 = sbr.rel (0) target = $region25
    $region24: #{tpu_custom_call.1} parent=1 // pred_region
      %61 = dma.done [#allocation6], 256
    $region25: #{tpu_custom_call.1} parent=1 // pred_fallthru
      _
    %p62 = scmp.eq.s32.totalorder 0, 0
    // Predicated region
    $region26: #{tpu_custom_call.1} parent=1 // pred_check
      %p63 = pneg %p62
    $region27: #{tpu_custom_call.1} parent=1 // pred_check_branch
      %65 = sbr.rel (%p63) target = $region29
    $region28: #{tpu_custom_call.1} parent=1 // pred_region
      %66 = vst [vmem:[#allocation8] sm:$0xff] 0.0
    $region29: #{tpu_custom_call.1} parent=1 // pred_fallthru
      _
    %v67 = vld [vmem:[#allocation2] sm:$0xff]
    %v68 = vld [vmem:[#allocation2 + $0x8] sm:$0xff]
    %v69 = vld [vmem:[#allocation5] sm:$0xff]
    %v70 = vld [vmem:[#allocation5 + $0x8] sm:$0xff]
    %v71 = vld [vmem:[#allocation7] sm:$0xff]
    %v72 = vld [vmem:[#allocation7 + $0x8] sm:$0xff]
    %v73 = vlog2.pop %v67
    %v74 = vmul.f32 %v73, 0.6931472
    %v75 = vlog2.pop %v68
    %v76 = vmul.f32 %v75, 0.6931472
    %v77 = vlog2.pop %v69
    %v78 = vmul.f32 %v77, 0.6931472
    %v79 = vlog2.pop %v70
    %v80 = vmul.f32 %v79, 0.6931472
    %v81 = vlog2.pop %v71
    %v82 = vmul.f32 %v81, 0.6931472
    %v83 = vlog2.pop %v72
    %v84 = vmul.f32 %v83, 0.6931472
    %v85 = vadd.f32 %v67, %v69
    %v86 = vadd.f32 %v68, %v70
    %v87 = vadd.f32 %v67, %v71
    %v88 = vadd.f32 %v68, %v72
    %v89 = vadd.f32 %v69, %v71
    %v90 = vadd.f32 %v70, %v72
    %v91 = vmul.f32 %v67, %v74
    %v92 = vmul.f32 %v68, %v76
    %v93 = vmul.f32 %v69, %v78
    %v94 = vmul.f32 %v70, %v80
    %v95 = vadd.f32 %v91, %v93
    %v96 = vadd.f32 %v92, %v94
    %v97 = vmul.f32 %v71, %v82
    %v98 = vmul.f32 %v72, %v84
    %v99 = vadd.f32 %v95, %v97
    %v100 = vadd.f32 %v96, %v98
    %v101 = vlog2.pop %v85
    %v102 = vmul.f32 %v101, 0.6931472
    %v103 = vlog2.pop %v86
    %v104 = vmul.f32 %v103, 0.6931472
    %v105 = vmul.f32 %v85, %v102
    %v106 = vmul.f32 %v86, %v104
    %v107 = vlog2.pop %v87
    %v108 = vmul.f32 %v107, 0.6931472
    %v109 = vlog2.pop %v88
    %v110 = vmul.f32 %v109, 0.6931472
    %v111 = vmul.f32 %v87, %v108
    %v112 = vmul.f32 %v88, %v110
    %v113 = vadd.f32 %v105, %v111
    %v114 = vadd.f32 %v106, %v112
    %v115 = vlog2.pop %v89
    %v116 = vmul.f32 %v115, 0.6931472
    %v117 = vlog2.pop %v90
    %v118 = vmul.f32 %v117, 0.6931472
    %v119 = vmul.f32 %v89, %v116
    %v120 = vmul.f32 %v90, %v118
    %v121 = vadd.f32 %v113, %v119
    %v122 = vadd.f32 %v114, %v120
    %v123 = vmul.f32 %v121, 0.5
    %v124 = vmul.f32 %v122, 0.5
    %v125 = vsub.f32 %v99, %v123
    %v126 = vsub.f32 %v100, %v124
    %v127 = vadd.f32 %v85, %v71
    %v128 = vadd.f32 %v86, %v72
    %v129 = vmul.f32 %v127, 0.6931472
    %v130 = vmul.f32 %v128, 0.6931472
    %v131 = vadd.f32 %v125, %v129
    %v132 = vadd.f32 %v126, %v130
    %s133 = smul.u32 0, 16
    %s134 = sadd.s32 %s133, 16
    %p135 = scmp.gt.s32.totalorder %s134, 16
    %p136 = scmp.le.s32.totalorder %s134, 16
    // Predicated region
    $region30: #{tpu_custom_call.1} parent=1 // pred_check
      %p137 = pneg %p136
    $region31: #{tpu_custom_call.1} parent=1 // pred_check_branch
      %139 = sbr.rel (%p137) target = $region33
    $region32: #{tpu_custom_call.1} parent=1 // pred_region
      %v140 = vld [vmem:[#allocation8] sm:$0xff]
      %v141 = vadd.f32 %v131, %v132
      %v142 = vadd.f32 %v140, %v141
      %143 = vst [vmem:[#allocation8] sm:$0xff] %v142
    $region33: #{tpu_custom_call.1} parent=1 // pred_fallthru
      _
    // Predicated region
    $region34: #{tpu_custom_call.1} parent=1 // pred_check
      %p144 = pneg %p135
    $region35: #{tpu_custom_call.1} parent=1 // pred_check_branch
      %146 = sbr.rel (%p144) target = $region37
    $region36: #{tpu_custom_call.1} parent=1 // pred_region
      %v147 = vlaneseq
      %v148 = vshrl.u32 %v147, 7
      %v149 = vadd.s32 %v148, 8
      %v150 = vstv %s133
      %v151 = vadd.s32 %v150, %v148
      %v152 = vadd.s32 %v150, %v149
      %vm153 = vcmp.lt.s32.totalorder %v151, 16
      %vm154 = vcmp.lt.s32.totalorder %v152, 16
      %v155 = vsel %vm153, 1, 0
      %v156 = vsel %vm154, 1, 0
      %vm157 = vcmp.eq.s32.totalorder %v155, 1
      %vm158 = vcmp.eq.s32.totalorder %v156, 1
      %v159 = vsel %vm157, %v131, 0.0
      %v160 = vsel %vm158, %v132, 0.0
      %v161 = vld [vmem:[#allocation8] sm:$0xff]
      %v162 = vadd.f32 %v159, %v160
      %v163 = vadd.f32 %v161, %v162
      %164 = vst [vmem:[#allocation8] sm:$0xff] %v163
    $region37: #{tpu_custom_call.1} parent=1 // pred_fallthru
      _
    // Predicated region
    $region38: #{tpu_custom_call.1} parent=1 // pred_check
      _
    $region39: #{tpu_custom_call.1} parent=1 // pred_check_branch
      %166 = sbr.rel (0) target = $region41
    $region40: #{tpu_custom_call.1} parent=1 // pred_region
      %168 = vsyncadd [#allocation4], 0
      %s170 = sshll.u32 [#allocation8], 4
      %s171 = int_to_ptr.vmem [resolvable:$true] %s170
      %s172 = sshll.u32 %s3, 4
      %s173 = int_to_ptr.hbm [resolvable:$true] %s172
      %175 = dma.vmem_to_hbm [thread:$0]  %s171, 128, %s173, [#allocation4]
    $region41: #{tpu_custom_call.1} parent=1 // pred_fallthru
      _
    // Predicated region
    $region42: #{tpu_custom_call.1} parent=1 // pred_check
      _
    $region43: #{tpu_custom_call.1} parent=1 // pred_check_branch
      %177 = sbr.rel (0) target = $region45
    $region44: #{tpu_custom_call.1} parent=1 // pred_region
      %179 = dma.done [#allocation4], 128
    $region45: #{tpu_custom_call.1} parent=1 // pred_fallthru
      _
    %180 = vsyncpa [#allocation3], 1
    %181 = vsyncpa [#allocation6], 1
    %182 = vsyncpa [#allocation4], 1

</llo_original>
